<compile_context>
chip_gen: v6e
topology: v6e:2x2x1
jax: 0.10.0
libtpu: 0.0.40
codegen_flags: <defaults>
</compile_context>

<pallas_src>
import functools

import jax
import jax.numpy as jnp
from jax import lax
from jax.experimental import pallas as pl
from jax.experimental.pallas import tpu as pltpu


def _pick_batch_block(n, hw, batch_block):
    """Images per grid step. Keep >=2 (ideally >=4) grid steps so the
    'parallel' axis can shard across v7x's two TensorCores and DMA overlaps
    compute; one image per step at larger spatial sizes."""
    if batch_block is not None:
        nb = batch_block
    elif hw >= 64 * 64:
        nb = 1
    else:
        nb = max(1, n // 4)
        nb = min(nb, max(1, n // 2))
    nb = max(1, min(nb, n))
    while n % nb:
        nb -= 1
    return nb


def _vmem_limit_bytes(est_bytes):
    # Derived per call (feedback); clamped to a v7x-safe scoped budget.
    return int(min(48 * 1024 * 1024, max(32 * 1024 * 1024, 4 * est_bytes)))


# ----------------------------------------------------------------------------
# Fused ReduceDim kernel: 1x1 conv (+bias) -> bf16 halo-padded VMEM scratch ->
# 3x3 conv (no bias) [-> ReLU], all in one grid step per batch block.
# ----------------------------------------------------------------------------
def _reduce_dim_fused_kernel(x_ref, w1_ref, b1_ref, w2_ref, o_ref, hp_ref, *, relu):
    # x_ref : (NB, H, W, Cin)      bf16
    # w1_ref: (Cin, Ch)            bf16
    # b1_ref: (1, Ch)              f32
    # w2_ref: (3, Ch, 3*Ch)        bf16  w2_ref[dw][ci, dh*Ch+co] = w2_hwio[dh,dw,ci,co]
    # o_ref : (NB, H, W, Ch)       bf16
    # hp_ref: (NB, Hp, Wp, Ch)     bf16 VMEM scratch (zero-padded intermediate)
    NB, H, W, Cin = x_ref.shape
    Ch = w1_ref.shape[1]
    Hp, Wp = H + 2, W + 2

    # Halo-only zeroing (interior is fully overwritten below). Done every grid
    # step so the kernel stays correct under megacore grid splitting.
    zrow = jnp.zeros((NB, 1, Wp, Ch), hp_ref.dtype)
    zcol = jnp.zeros((NB, Hp, 1, Ch), hp_ref.dtype)
    hp_ref[:, 0:1, :, :] = zrow
    hp_ref[:, Hp - 1:Hp, :, :] = zrow
    hp_ref[:, :, 0:1, :] = zcol
    hp_ref[:, :, Wp - 1:Wp, :] = zcol

    # --- 1x1 conv + bias: one (NB*H*W, Cin) @ (Cin, Ch) bf16 MXU matmul -----
    xm = x_ref[...].reshape(NB * H * W, Cin)
    h = jnp.dot(xm, w1_ref[...], preferred_element_type=jnp.float32)
    h = h + b1_ref[...]                                        # f32 epilogue
    hp_ref[:, 1:H + 1, 1:W + 1, :] = (
        h.reshape(NB, H, W, Ch).astype(hp_ref.dtype))          # pad interior

    # --- 3x3 conv (no bias): 3 MXU matmuls, dh taps stacked along N ----------
    # For each dw the input slab hp[:, :, dw:dw+W, :] feeds one matmul with a
    # (Ch, 3*Ch) weight; the dh-th Ch-wide output chunk, shifted by dh rows,
    # is added into the accumulator (seeded by the first tap).
    acc = None
    for dw in range(3):                                        # static, unrolled
        slab = hp_ref[:, :, dw:dw + W, :]                      # (NB, Hp, W, Ch)
        prod = jnp.dot(slab.reshape(NB * Hp * W, Ch), w2_ref[dw],
                       preferred_element_type=jnp.float32)
        prod = prod.reshape(NB, Hp, W, 3 * Ch)
        for dh in range(3):
            chunk = prod[:, dh:dh + H, :, dh * Ch:(dh + 1) * Ch]
            acc = chunk if acc is None else acc + chunk
    if relu:
        acc = jnp.maximum(acc, 0.0)
    o_ref[...] = acc.astype(o_ref.dtype)


def reduce_dim_fused(x, params, *, relu=False, batch_block=None):
    """ReduceDim(dim) forward (optionally fused with a trailing ReLU).

    x: (N, H, W, Cin) f32/bf16; params: w1 (1,1,Cin,Ch), b1 (Ch,), w2 (3,3,Ch,Ch).
    Returns bf16 (the reference path quantizes this intermediate to bf16 anyway).
    """
    N, H, W, Cin = x.shape
    w1, b1, w2 = params["w1"], params["b1"], params["w2"]
    Ch = w1.shape[-1]
    Hp, Wp = H + 2, W + 2
    NB = _pick_batch_block(N, H * W, batch_block)
    assert N % NB == 0

    xb = x.astype(jnp.bfloat16)
    w1f = w1.reshape(Cin, Ch).astype(jnp.bfloat16)
    b1f = b1.astype(jnp.float32).reshape(1, Ch)
    # (3, Ch, 3*Ch): dw-indexed, the 3 dh taps stacked along the output (N) dim.
    w2s = jnp.transpose(w2, (1, 2, 0, 3)).reshape(3, Ch, 3 * Ch).astype(jnp.bfloat16)

    flops = 2 * N * H * W * Cin * Ch + 2 * N * Hp * W * 9 * Ch * Ch
    bytes_accessed = (N * H * W * Cin * 2 + Cin * Ch * 2 + Ch * 4
                      + 9 * Ch * Ch * 2 + N * H * W * Ch * 2)
    vmem_est = (2 * NB * H * W * Cin * 2 + 2 * NB * H * W * Ch * 2
                + NB * Hp * Wp * Ch * 2
                + 2 * (Cin * Ch * 2 + Ch * 4 + 9 * Ch * Ch * 2))

    kern = functools.partial(_reduce_dim_fused_kernel, relu=relu)
    return pl.pallas_call(
        kern,
        out_shape=jax.ShapeDtypeStruct((N, H, W, Ch), jnp.bfloat16),
        grid_spec=pltpu.PrefetchScalarGridSpec(
            num_scalar_prefetch=0,
            grid=(N // NB,),
            in_specs=[
                pl.BlockSpec((NB, H, W, Cin), lambda n: (n, 0, 0, 0)),
                pl.BlockSpec((Cin, Ch), lambda n: (0, 0)),
                pl.BlockSpec((1, Ch), lambda n: (0, 0)),
                pl.BlockSpec((3, Ch, 3 * Ch), lambda n: (0, 0, 0)),
            ],
            out_specs=pl.BlockSpec((NB, H, W, Ch), lambda n: (n, 0, 0, 0)),
            scratch_shapes=[pltpu.VMEM((NB, Hp, Wp, Ch), jnp.bfloat16)],
        ),
        compiler_params=pltpu.CompilerParams(
            dimension_semantics=("parallel",),
            vmem_limit_bytes=_vmem_limit_bytes(vmem_est)),
        cost_estimate=pl.CostEstimate(flops=flops, transcendentals=0,
                                      bytes_accessed=bytes_accessed),
    )(xb, w1f, b1f, w2s)


# ----------------------------------------------------------------------------
# to_out kernel: 3x3 'same' conv with Cout=1, done as a 9-tap VPU MAC over a
# bf16 halo-padded scratch + lane channel-reduction (no 1-column MXU pass, no
# size-1 lane axis on stores).
# ----------------------------------------------------------------------------
def _to_out_kernel(x_ref, w_ref, b_ref, o_ref, xp_ref):
    # x_ref : (NB, H, W, Cin)   bf16
    # w_ref : (9, 1, Cin)       f32
    # b_ref : (1, 1)            f32
    # o_ref : (NB, H, W)        f32  (size-1 output channel dropped)
    # xp_ref: (NB, Hp, Wp, Cin) bf16 VMEM scratch (zero-padded input)
    NB, H, W, Cin = x_ref.shape
    Hp, Wp = H + 2, W + 2

    zrow = jnp.zeros((NB, 1, Wp, Cin), xp_ref.dtype)
    zcol = jnp.zeros((NB, Hp, 1, Cin), xp_ref.dtype)
    xp_ref[:, 0:1, :, :] = zrow
    xp_ref[:, Hp - 1:Hp, :, :] = zrow
    xp_ref[:, :, 0:1, :] = zcol
    xp_ref[:, :, Wp - 1:Wp, :] = zcol
    xp_ref[:, 1:H + 1, 1:W + 1, :] = x_ref[...]

    # 9-tap MAC: bf16 scratch loads (half the vld traffic), f32 math (v5e-safe),
    # accumulator seeded by the first tap.
    acc = None
    for dh in range(3):                                        # static, unrolled
        for dw in range(3):
            tap = xp_ref[:, dh:dh + H, dw:dw + W, :].astype(jnp.float32)
            term = tap * w_ref[dh * 3 + dw]                    # (1,Cin) broadcast
            acc = term if acc is None else acc + term
    red = jnp.sum(acc, axis=-1)                                # lane reduce (XLU)
    # TODO(synk): at production W>=128, fold W into lanes for a lane-dense store.
    o_ref[...] = (red + b_ref[0, 0]).astype(o_ref.dtype)


def to_out_conv(x, w, b, *, batch_block=None):
    """nn.Conv2d(dim, 1, 3, 1, 1). x: (N,H,W,Cin); w: (3,3,Cin,1); b: (1,)."""
    N, H, W, Cin = x.shape
    Hp, Wp = H + 2, W + 2
    NB = _pick_batch_block(N, H * W, batch_block)
    assert N % NB == 0

    xb = x.astype(jnp.bfloat16)
    wf = w.reshape(9, Cin).astype(jnp.float32)[:, None, :]     # (9, 1, Cin)
    bf = b.astype(jnp.float32).reshape(1, 1)

    flops = 2 * N * H * W * 9 * Cin
    bytes_accessed = N * H * W * Cin * 2 + 9 * Cin * 4 + 4 + N * H * W * 4
    vmem_est = (2 * NB * H * W * Cin * 2 + 2 * NB * H * W * 4
                + NB * Hp * Wp * Cin * 2 + 2 * 9 * Cin * 4)

    y = pl.pallas_call(
        _to_out_kernel,
        out_shape=jax.ShapeDtypeStruct((N, H, W), jnp.float32),
        grid_spec=pltpu.PrefetchScalarGridSpec(
            num_scalar_prefetch=0,
            grid=(N // NB,),
            in_specs=[
                pl.BlockSpec((NB, H, W, Cin), lambda n: (n, 0, 0, 0)),
                pl.BlockSpec((9, 1, Cin), lambda n: (0, 0, 0)),
                pl.BlockSpec((1, 1), lambda n: (0, 0)),
            ],
            out_specs=pl.BlockSpec((NB, H, W), lambda n: (n, 0, 0)),
            scratch_shapes=[pltpu.VMEM((NB, Hp, Wp, Cin), jnp.bfloat16)],
        ),
        compiler_params=pltpu.CompilerParams(
            dimension_semantics=("parallel",),
            vmem_limit_bytes=_vmem_limit_bytes(vmem_est)),
        cost_estimate=pl.CostEstimate(flops=flops, transcendentals=0,
                                      bytes_accessed=bytes_accessed),
    )(xb, wf, bf)
    return y.reshape(N, H, W, 1)


# ----------------------------------------------------------------------------
# Parameter init + pure-JAX references (bf16-quantized to match the kernels)
# ----------------------------------------------------------------------------
def init_reduce_dim(key, dim):
    half = dim // 2
    k1, k2, k3 = jax.random.split(key, 3)
    w1 = jax.random.normal(k1, (1, 1, dim, half), jnp.float32) / jnp.sqrt(dim)
    b1 = 0.01 * jax.random.normal(k2, (half,), jnp.float32)
    w2 = jax.random.normal(k3, (3, 3, half, half), jnp.float32) / jnp.sqrt(9.0 * half)
    return {"w1": w1, "b1": b1, "w2": w2}


def _ref_reduce_dim(x, params, relu=False):
    xb = x.astype(jnp.bfloat16)
    h = lax.conv_general_dilated(
        xb, params["w1"].astype(jnp.bfloat16), (1, 1), "SAME",
        dimension_numbers=("NHWC", "HWIO", "NHWC"),
        preferred_element_type=jnp.float32)
    h = h + params["b1"].astype(jnp.float32)
    hb = h.astype(jnp.bfloat16)
    y = lax.conv_general_dilated(
        hb, params["w2"].astype(jnp.bfloat16), (1, 1), "SAME",
        dimension_numbers=("NHWC", "HWIO", "NHWC"),
        preferred_element_type=jnp.float32)
    if relu:
        y = jnp.maximum(y, 0.0)
    return y


def _ref_to_out(x, w, b):
    xf = x.astype(jnp.bfloat16).astype(jnp.float32)
    y = lax.conv_general_dilated(
        xf, w.astype(jnp.float32), (1, 1), "SAME",
        dimension_numbers=("NHWC", "HWIO", "NHWC"))
    return y + b


if __name__ == "__main__":
    dim = 8          # scaled-down version of the module's dim=64
    batch = 2
    key = jax.random.PRNGKey(0)
    k_feat, k_rd4, k_rd1, k_out, k_f1, k_f2, k_sc, k_b = jax.random.split(key, 8)

    # --- reduce_dim_lv4 + ReLU: cat of the two level-4 encoder outputs -------
    # level-4 channels = dim*8 each -> 2*dim*8 = dim*16 channels, spatial 4x4
    lv4_cat = jax.random.normal(k_feat, (batch, 4, 4, dim * 16), jnp.float32)
    rd4_params = init_reduce_dim(k_rd4, dim * 16)
    feat_lv4 = reduce_dim_fused(lv4_cat, rd4_params, relu=True)

    # --- reduce_lv1to3[0]: cat of decoder feature and fused feature (dim*2) --
    rd1_params = init_reduce_dim(k_rd1, dim * 2)
    dec_feat = jax.random.normal(k_f1, (batch, 16, 16, dim), jnp.float32)
    fused_feat = jax.random.normal(k_f2, (batch, 16, 16, dim), jnp.float32)
    lv1_cat = jnp.concatenate([dec_feat, fused_feat], axis=-1)
    feat_lv1 = reduce_dim_fused(lv1_cat, rd1_params, relu=False)

    # --- to_out: Conv2d(dim, 1, 3, 1, 1) on cat([feature, shortcut]) ---------
    w_out = jax.random.normal(k_out, (3, 3, dim, 1), jnp.float32) / jnp.sqrt(9.0 * dim)
    b_out = 0.01 * jax.random.normal(k_b, (1,), jnp.float32)
    shortcut = jax.random.normal(k_sc, (batch, 16, 16, dim // 2), jnp.float32)
    to_out_in = jnp.concatenate(
        [feat_lv1[..., :dim // 2].astype(jnp.float32), shortcut], axis=-1)
    out = to_out_conv(to_out_in, w_out, b_out)

    jax.block_until_ready((feat_lv4, feat_lv1, out))

    # --- correctness vs bf16-quantized pure-JAX references -------------------
    ref4 = _ref_reduce_dim(lv4_cat, rd4_params, relu=True)
    ref1 = _ref_reduce_dim(lv1_cat, rd1_params, relu=False)
    refo = _ref_to_out(to_out_in, w_out, b_out)

    assert feat_lv4.shape == (batch, 4, 4, dim * 8)
    assert feat_lv1.shape == (batch, 16, 16, dim)
    assert out.shape == (batch, 16, 16, 1)
    assert jnp.allclose(feat_lv4.astype(jnp.float32), ref4, atol=2e-2, rtol=2e-2)
    assert jnp.allclose(feat_lv1.astype(jnp.float32), ref1, atol=2e-2, rtol=2e-2)
    assert jnp.allclose(out, refo, atol=1e-2, rtol=1e-2)

    print("KERNEL_OK")
</pallas_src>

<mosaic_0001>
module attributes {stable_mosaic.version = 11 : i64} {
  func.func @_reduce_dim_fused_kernel(%arg0: i32, %arg1: memref<1x4x4x128xbf16, #tpu.memory_space<vmem>>, %arg2: memref<128x64xbf16, #tpu.memory_space<vmem>>, %arg3: memref<1x64xf32, #tpu.memory_space<vmem>>, %arg4: memref<3x64x192xbf16, #tpu.memory_space<vmem>>, %arg5: memref<1x4x4x64xbf16, #tpu.memory_space<vmem>>, %arg6: memref<1x6x6x64xbf16, #tpu.memory_space<vmem>>) attributes {dimension_semantics = [#tpu.dimension_semantics<parallel>], iteration_bounds = array<i64: 2>, scalar_prefetch = 0 : i64, scratch_operands = 1 : i64, tpu.core_type = #tpu.core_type<tc>, window_params = [{transform_indices = @transform_0, window_bounds = array<i64: 1, 4, 4, 128>}, {pipeline_mode = #tpu.pipeline_mode<synchronous>, transform_indices = @transform_1, window_bounds = array<i64: 128, 64>}, {pipeline_mode = #tpu.pipeline_mode<synchronous>, transform_indices = @transform_2, window_bounds = array<i64: 1, 64>}, {pipeline_mode = #tpu.pipeline_mode<synchronous>, transform_indices = @transform_3, window_bounds = array<i64: 3, 64, 192>}, {transform_indices = @transform_4, window_bounds = array<i64: 1, 4, 4, 64>}]} {
    %cst = arith.constant 0.000000e+00 : bf16
    %0 = vector.broadcast %cst : bf16 to vector<1x1x6x64xbf16>
    %cst_0 = arith.constant 0.000000e+00 : bf16
    %1 = vector.broadcast %cst_0 : bf16 to vector<1x6x1x64xbf16>
    %c0 = arith.constant 0 : index
    %c0_1 = arith.constant 0 : index
    %c0_2 = arith.constant 0 : index
    %c0_3 = arith.constant 0 : index
    %2 = vector.load %arg6[%c0, %c0_1, %c0_2, %c0_3] : memref<1x6x6x64xbf16, #tpu.memory_space<vmem>>, vector<1x1x6x64xbf16>
    tpu.vector_store %arg6[%c0, %c0_1, %c0_2, %c0_3], %0 {strides = array<i32>} : memref<1x6x6x64xbf16, #tpu.memory_space<vmem>>, vector<1x1x6x64xbf16>,
    %c0_4 = arith.constant 0 : index
    %c5 = arith.constant 5 : index
    %c0_5 = arith.constant 0 : index
    %c0_6 = arith.constant 0 : index
    %3 = vector.load %arg6[%c0_4, %c5, %c0_5, %c0_6] : memref<1x6x6x64xbf16, #tpu.memory_space<vmem>>, vector<1x1x6x64xbf16>
    tpu.vector_store %arg6[%c0_4, %c5, %c0_5, %c0_6], %0 {strides = array<i32>} : memref<1x6x6x64xbf16, #tpu.memory_space<vmem>>, vector<1x1x6x64xbf16>,
    %c0_7 = arith.constant 0 : index
    %c0_8 = arith.constant 0 : index
    %c0_9 = arith.constant 0 : index
    %c0_10 = arith.constant 0 : index
    %4 = vector.load %arg6[%c0_7, %c0_8, %c0_9, %c0_10] : memref<1x6x6x64xbf16, #tpu.memory_space<vmem>>, vector<1x6x1x64xbf16>
    tpu.vector_store %arg6[%c0_7, %c0_8, %c0_9, %c0_10], %1 {strides = array<i32>} : memref<1x6x6x64xbf16, #tpu.memory_space<vmem>>, vector<1x6x1x64xbf16>,
    %c0_11 = arith.constant 0 : index
    %c0_12 = arith.constant 0 : index
    %c5_13 = arith.constant 5 : index
    %c0_14 = arith.constant 0 : index
    %5 = vector.load %arg6[%c0_11, %c0_12, %c5_13, %c0_14] : memref<1x6x6x64xbf16, #tpu.memory_space<vmem>>, vector<1x6x1x64xbf16>
    tpu.vector_store %arg6[%c0_11, %c0_12, %c5_13, %c0_14], %1 {strides = array<i32>} : memref<1x6x6x64xbf16, #tpu.memory_space<vmem>>, vector<1x6x1x64xbf16>,
    %c0_15 = arith.constant 0 : index
    %c0_16 = arith.constant 0 : index
    %c0_17 = arith.constant 0 : index
    %c0_18 = arith.constant 0 : index
    %6 = vector.load %arg1[%c0_15, %c0_16, %c0_17, %c0_18] : memref<1x4x4x128xbf16, #tpu.memory_space<vmem>>, vector<1x4x4x128xbf16>
    %7 = vector.shape_cast %6 : vector<1x4x4x128xbf16> to vector<16x128xbf16>
    %c0_19 = arith.constant 0 : index
    %c0_20 = arith.constant 0 : index
    %8 = vector.load %arg2[%c0_19, %c0_20] : memref<128x64xbf16, #tpu.memory_space<vmem>>, vector<128x64xbf16>
    %cst_21 = arith.constant dense<0.000000e+00> : vector<16x64xf32>
    %9 = tpu.matmul %7, %8, %cst_21 {dimension_numbers = #tpu.dot_dimension_numbers<[1], [0], [0], [1], [0, 0, 1, 1], [], []>} : vector<16x128xbf16>, vector<128x64xbf16>, vector<16x64xf32> -> vector<16x64xf32>
    %c0_22 = arith.constant 0 : index
    %c0_23 = arith.constant 0 : index
    %10 = vector.load %arg3[%c0_22, %c0_23] : memref<1x64xf32, #tpu.memory_space<vmem>>, vector<1x64xf32>
    %11 = vector.broadcast %10 : vector<1x64xf32> to vector<16x64xf32>
    %12 = arith.addf %9, %11 : vector<16x64xf32>
    %13 = vector.shape_cast %12 : vector<16x64xf32> to vector<1x4x4x64xf32>
    %14 = arith.truncf %13 : vector<1x4x4x64xf32> to vector<1x4x4x64xbf16>
    %c0_24 = arith.constant 0 : index
    %c1 = arith.constant 1 : index
    %c1_25 = arith.constant 1 : index
    %c0_26 = arith.constant 0 : index
    %15 = vector.load %arg6[%c0_24, %c1, %c1_25, %c0_26] : memref<1x6x6x64xbf16, #tpu.memory_space<vmem>>, vector<1x4x4x64xbf16>
    tpu.vector_store %arg6[%c0_24, %c1, %c1_25, %c0_26], %14 {strides = array<i32>} : memref<1x6x6x64xbf16, #tpu.memory_space<vmem>>, vector<1x4x4x64xbf16>,
    %c0_27 = arith.constant 0 : index
    %c0_28 = arith.constant 0 : index
    %c0_29 = arith.constant 0 : index
    %c0_30 = arith.constant 0 : index
    %16 = vector.load %arg6[%c0_27, %c0_28, %c0_29, %c0_30] : memref<1x6x6x64xbf16, #tpu.memory_space<vmem>>, vector<1x6x4x64xbf16>
    %17 = vector.shape_cast %16 : vector<1x6x4x64xbf16> to vector<24x64xbf16>
    %c0_31 = arith.constant 0 : index
    %c0_32 = arith.constant 0 : index
    %c0_33 = arith.constant 0 : index
    %18 = vector.load %arg4[%c0_31, %c0_32, %c0_33] : memref<3x64x192xbf16, #tpu.memory_space<vmem>>, vector<1x64x192xbf16>
    %19 = vector.shape_cast %18 : vector<1x64x192xbf16> to vector<64x192xbf16>
    %cst_34 = arith.constant dense<0.000000e+00> : vector<24x192xf32>
    %20 = tpu.matmul %17, %19, %cst_34 {dimension_numbers = #tpu.dot_dimension_numbers<[1], [0], [0], [1], [0, 0, 1, 1], [], []>} : vector<24x64xbf16>, vector<64x192xbf16>, vector<24x192xf32> -> vector<24x192xf32>
    %21 = vector.shape_cast %20 : vector<24x192xf32> to vector<1x6x4x192xf32>
    %22 = vector.extract_strided_slice %21 {offsets = [0, 0, 0, 0], sizes = [1, 4, 4, 64], strides = [1, 1, 1, 1]} : vector<1x6x4x192xf32> to vector<1x4x4x64xf32>
    %23 = vector.extract_strided_slice %21 {offsets = [0, 1, 0, 64], sizes = [1, 4, 4, 64], strides = [1, 1, 1, 1]} : vector<1x6x4x192xf32> to vector<1x4x4x64xf32>
    %24 = arith.addf %22, %23 : vector<1x4x4x64xf32>
    %25 = vector.extract_strided_slice %21 {offsets = [0, 2, 0, 128], sizes = [1, 4, 4, 64], strides = [1, 1, 1, 1]} : vector<1x6x4x192xf32> to vector<1x4x4x64xf32>
    %26 = arith.addf %24, %25 : vector<1x4x4x64xf32>
    %c0_35 = arith.constant 0 : index
    %c0_36 = arith.constant 0 : index
    %c1_37 = arith.constant 1 : index
    %c0_38 = arith.constant 0 : index
    %27 = vector.load %arg6[%c0_35, %c0_36, %c1_37, %c0_38] : memref<1x6x6x64xbf16, #tpu.memory_space<vmem>>, vector<1x6x4x64xbf16>
    %28 = vector.shape_cast %27 : vector<1x6x4x64xbf16> to vector<24x64xbf16>
    %c1_39 = arith.constant 1 : index
    %c0_40 = arith.constant 0 : index
    %c0_41 = arith.constant 0 : index
    %29 = vector.load %arg4[%c1_39, %c0_40, %c0_41] : memref<3x64x192xbf16, #tpu.memory_space<vmem>>, vector<1x64x192xbf16>
    %30 = vector.shape_cast %29 : vector<1x64x192xbf16> to vector<64x192xbf16>
    %cst_42 = arith.constant dense<0.000000e+00> : vector<24x192xf32>
    %31 = tpu.matmul %28, %30, %cst_42 {dimension_numbers = #tpu.dot_dimension_numbers<[1], [0], [0], [1], [0, 0, 1, 1], [], []>} : vector<24x64xbf16>, vector<64x192xbf16>, vector<24x192xf32> -> vector<24x192xf32>
    %32 = vector.shape_cast %31 : vector<24x192xf32> to vector<1x6x4x192xf32>
    %33 = vector.extract_strided_slice %32 {offsets = [0, 0, 0, 0], sizes = [1, 4, 4, 64], strides = [1, 1, 1, 1]} : vector<1x6x4x192xf32> to vector<1x4x4x64xf32>
    %34 = arith.addf %26, %33 : vector<1x4x4x64xf32>
    %35 = vector.extract_strided_slice %32 {offsets = [0, 1, 0, 64], sizes = [1, 4, 4, 64], strides = [1, 1, 1, 1]} : vector<1x6x4x192xf32> to vector<1x4x4x64xf32>
    %36 = arith.addf %34, %35 : vector<1x4x4x64xf32>
    %37 = vector.extract_strided_slice %32 {offsets = [0, 2, 0, 128], sizes = [1, 4, 4, 64], strides = [1, 1, 1, 1]} : vector<1x6x4x192xf32> to vector<1x4x4x64xf32>
    %38 = arith.addf %36, %37 : vector<1x4x4x64xf32>
    %c0_43 = arith.constant 0 : index
    %c0_44 = arith.constant 0 : index
    %c2 = arith.constant 2 : index
    %c0_45 = arith.constant 0 : index
    %39 = vector.load %arg6[%c0_43, %c0_44, %c2, %c0_45] : memref<1x6x6x64xbf16, #tpu.memory_space<vmem>>, vector<1x6x4x64xbf16>
    %40 = vector.shape_cast %39 : vector<1x6x4x64xbf16> to vector<24x64xbf16>
    %c2_46 = arith.constant 2 : index
    %c0_47 = arith.constant 0 : index
    %c0_48 = arith.constant 0 : index
    %41 = vector.load %arg4[%c2_46, %c0_47, %c0_48] : memref<3x64x192xbf16, #tpu.memory_space<vmem>>, vector<1x64x192xbf16>
    %42 = vector.shape_cast %41 : vector<1x64x192xbf16> to vector<64x192xbf16>
    %cst_49 = arith.constant dense<0.000000e+00> : vector<24x192xf32>
    %43 = tpu.matmul %40, %42, %cst_49 {dimension_numbers = #tpu.dot_dimension_numbers<[1], [0], [0], [1], [0, 0, 1, 1], [], []>} : vector<24x64xbf16>, vector<64x192xbf16>, vector<24x192xf32> -> vector<24x192xf32>
    %44 = vector.shape_cast %43 : vector<24x192xf32> to vector<1x6x4x192xf32>
    %45 = vector.extract_strided_slice %44 {offsets = [0, 0, 0, 0], sizes = [1, 4, 4, 64], strides = [1, 1, 1, 1]} : vector<1x6x4x192xf32> to vector<1x4x4x64xf32>
    %46 = arith.addf %38, %45 : vector<1x4x4x64xf32>
    %47 = vector.extract_strided_slice %44 {offsets = [0, 1, 0, 64], sizes = [1, 4, 4, 64], strides = [1, 1, 1, 1]} : vector<1x6x4x192xf32> to vector<1x4x4x64xf32>
    %48 = arith.addf %46, %47 : vector<1x4x4x64xf32>
    %49 = vector.extract_strided_slice %44 {offsets = [0, 2, 0, 128], sizes = [1, 4, 4, 64], strides = [1, 1, 1, 1]} : vector<1x6x4x192xf32> to vector<1x4x4x64xf32>
    %50 = arith.addf %48, %49 : vector<1x4x4x64xf32>
    %cst_50 = arith.constant 0.000000e+00 : f32
    %51 = vector.broadcast %cst_50 : f32 to vector<1x4x4x64xf32>
    %52 = arith.maximumf %50, %51 : vector<1x4x4x64xf32>
    %53 = arith.truncf %52 : vector<1x4x4x64xf32> to vector<1x4x4x64xbf16>
    %c0_51 = arith.constant 0 : index
    %c0_52 = arith.constant 0 : index
    %c0_53 = arith.constant 0 : index
    %c0_54 = arith.constant 0 : index
    %54 = vector.load %arg5[%c0_51, %c0_52, %c0_53, %c0_54] : memref<1x4x4x64xbf16, #tpu.memory_space<vmem>>, vector<1x4x4x64xbf16>
    tpu.vector_store %arg5[%c0_51, %c0_52, %c0_53, %c0_54], %53 {strides = array<i32>} : memref<1x4x4x64xbf16, #tpu.memory_space<vmem>>, vector<1x4x4x64xbf16>,
    return
  }
  func.func @transform_0(%arg0: i32) -> (i32, i32, i32, i32) {
    %c0_i32 = arith.constant 0 : i32
    %c0_i32_0 = arith.constant 0 : i32
    %c0_i32_1 = arith.constant 0 : i32
    %c0_i32_2 = arith.constant 0 : i32
    return %arg0, %c0_i32, %c0_i32_0, %c0_i32_1 : i32, i32, i32, i32
  }
  func.func @transform_1(%arg0: i32) -> (i32, i32) {
    %c0_i32 = arith.constant 0 : i32
    %c0_i32_0 = arith.constant 0 : i32
    %c0_i32_1 = arith.constant 0 : i32
    return %c0_i32, %c0_i32_0 : i32, i32
  }
  func.func @transform_2(%arg0: i32) -> (i32, i32) {
    %c0_i32 = arith.constant 0 : i32
    %c0_i32_0 = arith.constant 0 : i32
    %c0_i32_1 = arith.constant 0 : i32
    return %c0_i32, %c0_i32_0 : i32, i32
  }
  func.func @transform_3(%arg0: i32) -> (i32, i32, i32) {
    %c0_i32 = arith.constant 0 : i32
    %c0_i32_0 = arith.constant 0 : i32
    %c0_i32_1 = arith.constant 0 : i32
    %c0_i32_2 = arith.constant 0 : i32
    return %c0_i32, %c0_i32_0, %c0_i32_1 : i32, i32, i32
  }
  func.func @transform_4(%arg0: i32) -> (i32, i32, i32, i32) {
    %c0_i32 = arith.constant 0 : i32
    %c0_i32_0 = arith.constant 0 : i32
    %c0_i32_1 = arith.constant 0 : i32
    %c0_i32_2 = arith.constant 0 : i32
    return %arg0, %c0_i32, %c0_i32_0, %c0_i32_1 : i32, i32, i32, i32
  }
}

</mosaic_0001>

<llo_original>
// kernel: tpu_custom_call.1
$region0: #{tpu_custom_call.1}
  #allocation0 [shape = 'u32[]', space=smem, size = 0x4, offset = 0x4, fixed_abs, tag = 'smem constant byte address 0x4 - core index']
  #allocation1 [shape = 'u32[144,128]{1,0:T(1,128)}', space=vmem, size = 0x12000, scoped, tag = 'internal scratch']
  #allocation2 [shape = 'bf16[1,6,6,64]{3,2,1,0:T(8,128)(2,1)}', space=vmem, size = 0x3000, scoped, tag = 'scratch operand']
  %s0 = inlined_call_operand.vmem [shape: bf16[2,4,4,128], index: 0, kind: input, shape index: {}]
  %s1 = inlined_call_operand.vmem [shape: bf16[128,64], index: 1, kind: input, shape index: {}]
  %s2 = inlined_call_operand.vmem [shape: f32[1,64], index: 2, kind: input, shape index: {}]
  %s3 = inlined_call_operand.hbm [shape: bf16[3,64,192], index: 3, kind: input, shape index: {}]
  %s4 = inlined_call_operand.hbm [shape: bf16[2,4,4,64], index: 4, kind: output, shape index: {}]
  %s5 = sld [smem:[#allocation0]]
  $region53: #{tpu_custom_call.1} parent=0
    _
  %s7 = ssub.s32 1, %s5
  %s8 = scalar_select 0, %s7, %s5
  $region1: #{tpu_custom_call.1} parent=0
    #allocation3 [shape = 'u8[98304]{0}', space=vmem, size = 0x18000, scoped, tag = 'input window, operand 3, single buffered']
    #allocation4 [shape = 's32[2]{0}', space=sflag, size = 0x8, scoped, tag = 'scoped memory for tpu_custom_call.1']
    #allocation5 [shape = 's32[2]{0}', space=sflag, size = 0x8, scoped, tag = 'scoped memory for tpu_custom_call.1']
    #allocation6 [shape = 'u8[8192]{0}', space=vmem, size = 0x2000, scoped, tag = 'output window, operand 0']
    %9 = vsyncpa [#allocation4], 0
    %10 = vsyncpa [#allocation5], 0
    %s11 = scalar_lea.sflag [#allocation5], 1
    %12 = vsyncpa %s11, 0
    loop: start=0, step=1, limit=4
    $region2: #{tpu_custom_call.1} parent=1 // loop_pre_header
      _
    $region3: #{tpu_custom_call.1} parent=1 // loop_header
      %s14 = sphi 0, %s18
      %p15 = scmp.ge.s32.totalorder %s14, 4
      %s24 = sphi 0, %s26
      %s27 = sphi 0, %s24
      %s28 = sphi 0, %s27
      %s44 = sphi 0, %s28
      %s48 = sphi 0, %s48
      %s50 = sphi 0, %s48
      %s51 = sphi 0, %s50
      %s65 = sphi 0, %s51
      %s69 = sphi 0, %s69
      %s71 = sphi 0, %s69
      %s72 = sphi 0, %s71
      %s86 = sphi 0, %s72
      %s90 = sphi 0, %s90
      %s92 = sphi 0, %s90
      %s93 = sphi 0, %s92
      %s107 = sphi 0, %s93
      %s113 = sphi 0, %s115
      %s116 = sphi 0, %s113
      %s117 = sphi 0, %s116
      %s133 = sphi 0, %s117
    $region4: #{tpu_custom_call.1} parent=1 // loop_header_branch
      %17 = sbr.rel (%p15) target = $region8
    $region5: #{tpu_custom_call.1} parent=1 // loop_body
      %s19 = ssub.s32 %s14, 1
      %s20 = ssub.s32 %s14, 2
      %s21 = sadd.s32 %s14, 1
      %s22 = ssub.s32 %s14, %s21
      %p23 = scmp.eq.s32.totalorder %s22, 0
      %s25 = sadd.s32 %s24, 1
      %s26 = scalar_select %p23, %s24, %s25
      %p29 = pneg %p23
      %p30 = scmp.eq.s32.totalorder %s14, 1
      %p31 = por %p29, %p30
      %p32 = scmp.ne.s32.totalorder %s24, %s27
      %p33 = scmp.eq.s32.totalorder %s14, 0
      %p34 = por %p32, %p33
      %p35 = scmp.ne.s32.totalorder %s24, %s27
      %p36 = scmp.eq.s32.totalorder %s19, 1
      %p37 = por %p35, %p36
      %p38 = scmp.ne.s32.totalorder %s27, %s28
      %p39 = scmp.eq.s32.totalorder %s19, 0
      %p40 = por %p38, %p39
      %p41 = scmp.ne.s32.totalorder %s27, %s28
      %p42 = scmp.eq.s32.totalorder %s20, 1
      %p43 = por %p41, %p42
      %p45 = scmp.ne.s32.totalorder %s28, %s44
      %p46 = scmp.eq.s32.totalorder %s20, 0
      %p47 = por %p45, %p46
      %s49 = sadd.s32 %s48, 1
      %p52 = scmp.eq.s32.totalorder %s14, 1
      %p53 = scmp.ne.s32.totalorder %s48, %s50
      %p54 = scmp.eq.s32.totalorder %s14, 0
      %p55 = por %p53, %p54
      %p56 = scmp.ne.s32.totalorder %s48, %s50
      %p57 = scmp.eq.s32.totalorder %s19, 1
      %p58 = por %p56, %p57
      %p59 = scmp.ne.s32.totalorder %s50, %s51
      %p60 = scmp.eq.s32.totalorder %s19, 0
      %p61 = por %p59, %p60
      %p62 = scmp.ne.s32.totalorder %s50, %s51
      %p63 = scmp.eq.s32.totalorder %s20, 1
      %p64 = por %p62, %p63
      %p66 = scmp.ne.s32.totalorder %s51, %s65
      %p67 = scmp.eq.s32.totalorder %s20, 0
      %p68 = por %p66, %p67
      %s70 = sadd.s32 %s69, 1
      %p73 = scmp.eq.s32.totalorder %s14, 1
      %p74 = scmp.ne.s32.totalorder %s69, %s71
      %p75 = scmp.eq.s32.totalorder %s14, 0
      %p76 = por %p74, %p75
      %p77 = scmp.ne.s32.totalorder %s69, %s71
      %p78 = scmp.eq.s32.totalorder %s19, 1
      %p79 = por %p77, %p78
      %p80 = scmp.ne.s32.totalorder %s71, %s72
      %p81 = scmp.eq.s32.totalorder %s19, 0
      %p82 = por %p80, %p81
      %p83 = scmp.ne.s32.totalorder %s71, %s72
      %p84 = scmp.eq.s32.totalorder %s20, 1
      %p85 = por %p83, %p84
      %p87 = scmp.ne.s32.totalorder %s72, %s86
      %p88 = scmp.eq.s32.totalorder %s20, 0
      %p89 = por %p87, %p88
      %s91 = sadd.s32 %s90, 1
      %p94 = scmp.eq.s32.totalorder %s14, 1
      %p95 = scmp.ne.s32.totalorder %s90, %s92
      %p96 = scmp.eq.s32.totalorder %s14, 0
      %p97 = por %p95, %p96
      %p98 = scmp.ne.s32.totalorder %s90, %s92
      %p99 = scmp.eq.s32.totalorder %s19, 1
      %p100 = por %p98, %p99
      %p101 = scmp.ne.s32.totalorder %s92, %s93
      %p102 = scmp.eq.s32.totalorder %s19, 0
      %p103 = por %p101, %p102
      %p104 = scmp.ne.s32.totalorder %s92, %s93
      %p105 = scmp.eq.s32.totalorder %s20, 1
      %p106 = por %p104, %p105
      %p108 = scmp.ne.s32.totalorder %s93, %s107
      %p109 = scmp.eq.s32.totalorder %s20, 0
      %p110 = por %p108, %p109
      %s111 = ssub.s32 %s14, %s21
      %p112 = scmp.eq.s32.totalorder %s111, 0
      %s114 = sadd.s32 %s113, 1
      %s115 = scalar_select %p112, %s113, %s114
      %p118 = pneg %p112
      %p119 = scmp.eq.s32.totalorder %s14, 1
      %p120 = por %p118, %p119
      %p121 = scmp.ne.s32.totalorder %s113, %s116
      %p122 = scmp.eq.s32.totalorder %s14, 0
      %p123 = por %p121, %p122
      %p124 = scmp.ne.s32.totalorder %s113, %s116
      %p125 = scmp.eq.s32.totalorder %s19, 1
      %p126 = por %p124, %p125
      %p127 = scmp.ne.s32.totalorder %s116, %s117
      %p128 = scmp.eq.s32.totalorder %s19, 0
      %p129 = por %p127, %p128
      %p130 = scmp.ne.s32.totalorder %s116, %s117
      %p131 = scmp.eq.s32.totalorder %s20, 1
      %p132 = por %p130, %p131
      %p134 = scmp.ne.s32.totalorder %s117, %s133
      %p135 = scmp.eq.s32.totalorder %s20, 0
      %p136 = por %p134, %p135
      %p137 = scmp.le.s32.totalorder 1, %s14
      %p138 = scmp.lt.s32.totalorder %s14, 3
      %p139 = pnand %p137, %p138
      %p140 = pneg %p139
      // Predicated region
      $region9: #{tpu_custom_call.1} parent=5 // pred_check
        _
      $region10: #{tpu_custom_call.1} parent=5 // pred_check_branch
        %142 = sbr.rel (%p139) target = $region12
      $region11: #{tpu_custom_call.1} parent=5 // pred_region
        %s143 = ssub.s32 %s14, 1
        // Predicated region
        $region13: #{tpu_custom_call.1} parent=11 // pred_check
          %p144 = pneg %p61
        $region14: #{tpu_custom_call.1} parent=11 // pred_check_branch
          %146 = sbr.rel (%p144) target = $region16
        $region15: #{tpu_custom_call.1} parent=11 // pred_region
          _
        $region16: #{tpu_custom_call.1} parent=11 // pred_fallthru
          _
        // Predicated region
        $region17: #{tpu_custom_call.1} parent=11 // pred_check
          %p147 = pneg %p82
        $region18: #{tpu_custom_call.1} parent=11 // pred_check_branch
          %149 = sbr.rel (%p147) target = $region20
        $region19: #{tpu_custom_call.1} parent=11 // pred_region
          _
        $region20: #{tpu_custom_call.1} parent=11 // pred_fallthru
          _
        // Predicated region
        $region21: #{tpu_custom_call.1} parent=11 // pred_check
          %p150 = pneg %p103
        $region22: #{tpu_custom_call.1} parent=11 // pred_check_branch
          %152 = sbr.rel (%p150) target = $region24
        $region23: #{tpu_custom_call.1} parent=11 // pred_region
          %s154 = ssub.s32 3072, 3072
          %155 = vsyncadd [#allocation4], %s154
          %s156 = sshll.u32 [#allocation3], 4
          %s157 = int_to_ptr.vmem [resolvable:$true] %s156
          %162 = dma.hbm_to_vmem [thread:$0]  %s3, 3072, %s157, [#allocation4], 128, 128, 8
        $region24: #{tpu_custom_call.1} parent=11 // pred_fallthru
          _
      $region12: #{tpu_custom_call.1} parent=5 // pred_fallthru
        _
      %p163 = scmp.lt.s32.totalorder %s14, 2
      // Predicated region
      $region25: #{tpu_custom_call.1} parent=5 // pred_check
        %p164 = pneg %p163
      $region26: #{tpu_custom_call.1} parent=5 // pred_check_branch
        %166 = sbr.rel (%p164) target = $region28
      $region27: #{tpu_custom_call.1} parent=5 // pred_region
        // Predicated region
        $region29: #{tpu_custom_call.1} parent=27 // pred_check
          %p167 = pneg %p34
        $region30: #{tpu_custom_call.1} parent=27 // pred_check_branch
          %169 = sbr.rel (%p167) target = $region32
        $region31: #{tpu_custom_call.1} parent=27 // pred_region
          %p170 = scmp.lt.s32.totalorder %s14, 1
          %s171 = scalar_select %p170, %s14, 1
          %s172 = smul.addr %s171, 4
          %s173 = smul.addr %s172, 2
          %s174 = scalar_lea.vmem %s0, %s173
        $region32: #{tpu_custom_call.1} parent=27 // pred_fallthru
          _
      $region28: #{tpu_custom_call.1} parent=5 // pred_fallthru
        _
      %p175 = scmp.le.s32.totalorder 1, %s14
      %p176 = scmp.lt.s32.totalorder %s14, 3
      %p177 = pnand %p175, %p176
      %p178 = pneg %p177
      // Predicated region
      $region33: #{tpu_custom_call.1} parent=5 // pred_check
        _
      $region34: #{tpu_custom_call.1} parent=5 // pred_check_branch
        %180 = sbr.rel (%p177) target = $region36
      $region35: #{tpu_custom_call.1} parent=5 // pred_region
        %s181 = ssub.s32 %s14, 1
        // Predicated region
        $region37: #{tpu_custom_call.1} parent=35 // pred_check
          %p182 = pneg %p103
        $region38: #{tpu_custom_call.1} parent=35 // pred_check_branch
          %184 = sbr.rel (%p182) target = $region40
        $region39: #{tpu_custom_call.1} parent=35 // pred_region
          %185 = dma.done [#allocation4], 3072
        $region40: #{tpu_custom_call.1} parent=35 // pred_fallthru
          _
        %p186 = scmp.lt.s32.totalorder %s19, 1
        %s187 = scalar_select %p186, %s19, 1
        %s188 = smul.addr %s187, 4
        %s189 = smul.addr %s188, 2
        %s190 = scalar_lea.vmem %s0, %s189
        %p191 = pneg %p40
        %p192 = pneg %p37
        %p193 = pneg %p61
        %p194 = pneg %p58
        %p195 = pneg %p82
        %p196 = pneg %p79
        %p197 = pneg %p103
        %p198 = pneg %p100
        %p199 = pneg %p129
        %p200 = pneg %p126
        %s201 = sand.u32 %s116, 1
        %s202 = scalar_lea.sflag [#allocation5], %s201
        %s203 = sand.u32 %s116, 1
        %s204 = smul.addr %s203, 8
        %s205 = scalar_lea.vmem [#allocation6], %s204
        %p206 = scmp.lt.s32.totalorder %s19, 1
        %s207 = scalar_select %p206, %s19, 1
        %s208 = smul.addr %s207, 4
        %s209 = smul.addr %s208, 2
        %s210 = scalar_lea.vmem %s0, %s209
        %vm212 = vcmask 518144
        %213 = vst.msk [vmem:[#allocation2] sm:$0x7] %vm212, 0
        %s214 = scalar_lea.vmem [#allocation2], 20
        %215 = vst.msk [vmem:[%s214] sm:$0x7] %vm212, 0
        %vm216 = vcmask 516096
        %vm217 = vsmask.f32 256
        %vm218 = vmand %vm216, %vm217
        %v219 = vld [vmem:[#allocation2] sm:$0x1]
        %v220 = vsel %vm218, 0, %v219
        %221 = vst [vmem:[#allocation2] sm:$0x1] %v220
        %v222 = vld [vmem:[#allocation2 + $0x4] sm:$0x1]
        %v223 = vsel %vm218, 0, %v222
        %224 = vst [vmem:[#allocation2 + $0x4] sm:$0x1] %v223
        %v225 = vld [vmem:[#allocation2 + $0x8] sm:$0x1]
        %v226 = vsel %vm218, 0, %v225
        %227 = vst [vmem:[#allocation2 + $0x8] sm:$0x1] %v226
        %v228 = vld [vmem:[#allocation2 + $0xc] sm:$0x1]
        %v229 = vsel %vm218, 0, %v228
        %230 = vst [vmem:[#allocation2 + $0xc] sm:$0x1] %v229
        %v231 = vld [vmem:[#allocation2 + $0x10] sm:$0x1]
        %v232 = vsel %vm218, 0, %v231
        %233 = vst [vmem:[#allocation2 + $0x10] sm:$0x1] %v232
        %v234 = vld [vmem:[#allocation2 + $0x14] sm:$0x1]
        %v235 = vsel %vm218, 0, %v234
        %236 = vst [vmem:[#allocation2 + $0x14] sm:$0x1] %v235
        %vm237 = vcmask 518146
        %vm238 = vsmask.f32 7946
        %vm239 = vmand %vm237, %vm238
        %v240 = vld [vmem:[#allocation2] sm:$0x4]
        %v241 = vsel %vm239, 0, %v240
        %242 = vst [vmem:[#allocation2] sm:$0x4] %v241
        %v243 = vld [vmem:[#allocation2 + $0x4] sm:$0x4]
        %v244 = vsel %vm239, 0, %v243
        %245 = vst [vmem:[#allocation2 + $0x4] sm:$0x4] %v244
        %v246 = vld [vmem:[#allocation2 + $0x8] sm:$0x4]
        %v247 = vsel %vm239, 0, %v246
        %248 = vst [vmem:[#allocation2 + $0x8] sm:$0x4] %v247
        %v249 = vld [vmem:[#allocation2 + $0xc] sm:$0x4]
        %v250 = vsel %vm239, 0, %v249
        %251 = vst [vmem:[#allocation2 + $0xc] sm:$0x4] %v250
        %v252 = vld [vmem:[#allocation2 + $0x10] sm:$0x4]
        %v253 = vsel %vm239, 0, %v252
        %254 = vst [vmem:[#allocation2 + $0x10] sm:$0x4] %v253
        %v255 = vld [vmem:[#allocation2 + $0x14] sm:$0x4]
        %v256 = vsel %vm239, 0, %v255
        %257 = vst [vmem:[#allocation2 + $0x14] sm:$0x4] %v256
        %v258 = vld [vmem:[%s210] sm:$0x3]
        %v259 = vld [vmem:[%s210 + $0x2] sm:$0x3]
        %v260 = vld [vmem:[%s210 + $0x4] sm:$0x3]
        %v261 = vld [vmem:[%s210 + $0x6] sm:$0x3]
        %v262 = vld [vmem:[%s1] sm:$0xf]
        %v263 = vld [vmem:[%s1 + $0x4] sm:$0xf]
        %v264 = vld [vmem:[%s1 + $0x8] sm:$0xf]
        %v265 = vld [vmem:[%s1 + $0xc] sm:$0xf]
        %v266 = vld [vmem:[%s1 + $0x10] sm:$0xf]
        %v267 = vld [vmem:[%s1 + $0x14] sm:$0xf]
        %v268 = vld [vmem:[%s1 + $0x18] sm:$0xf]
        %v269 = vld [vmem:[%s1 + $0x1c] sm:$0xf]
        %v270 = vld [vmem:[%s1 + $0x20] sm:$0xf]
        %v271 = vld [vmem:[%s1 + $0x24] sm:$0xf]
        %v272 = vld [vmem:[%s1 + $0x28] sm:$0xf]
        %v273 = vld [vmem:[%s1 + $0x2c] sm:$0xf]
        %v274 = vld [vmem:[%s1 + $0x30] sm:$0xf]
        %v275 = vld [vmem:[%s1 + $0x34] sm:$0xf]
        %v276 = vld [vmem:[%s1 + $0x38] sm:$0xf]
        %v277 = vld [vmem:[%s1 + $0x3c] sm:$0xf]
        %v278 = vld [vmem:[%s2] sm:$0x1]
        %v280 = vlaneseq
        %v281 = vshrl.u32 %v280, 7
        %v282 = vsub.s32 0, %v281
        %v283 = vrot.slane %v278, %v282
        %v289 = vcombine.low %v258, %v259
        %v290 = vcombine.low %v260, %v261
        %v292 = vunpack.c.l.s4 1983009808
        %v293 = vunpack.c.0.s8 %v292
        %v294 = vlaneseq
        %v295 = vshrl.u32 %v294, 7
        %v296 = vsub.s32 %v293, %v295
        %v297 = vrot.slane %v289, %v296
        %v299 = vunpack.c.l.s4 1983009808
        %v300 = vunpack.c.0.s8 %v299
        %v301 = vlaneseq
        %v302 = vshrl.u32 %v301, 7
        %v303 = vsub.s32 %v300, %v302
        %v304 = vrot.slane %v290, %v303
        %v305 = vcombine.low %v297, %v304
        %v323 = vunpack.c.l.b16 %v262
        %v324 = vunpack.c.l.b16 %v263
        %v325 = vunpack.c.l.b16 %v264
        %v326 = vunpack.c.l.b16 %v265
        %v327 = vunpack.c.l.b16 %v266
        %v328 = vunpack.c.l.b16 %v267
        %v329 = vunpack.c.l.b16 %v268
        %v330 = vunpack.c.l.b16 %v269
        %v331 = vunpack.c.l.b16 %v270
        %v332 = vunpack.c.l.b16 %v271
        %v333 = vunpack.c.l.b16 %v272
        %v334 = vunpack.c.l.b16 %v273
        %v335 = vunpack.c.l.b16 %v274
        %v336 = vunpack.c.l.b16 %v275
        %v337 = vunpack.c.l.b16 %v276
        %v338 = vunpack.c.l.b16 %v277
        %v339 = vpack.c.b16 %v324, %v323
        %v340 = vpack.c.b16 %v326, %v325
        %v341 = vpack.c.b16 %v328, %v327
        %v342 = vpack.c.b16 %v330, %v329
        %v343 = vpack.c.b16 %v332, %v331
        %v344 = vpack.c.b16 %v334, %v333
        %v345 = vpack.c.b16 %v336, %v335
        %v346 = vpack.c.b16 %v338, %v337
        %355 = vmatprep.subr.bf16.mxu0 0
        %356 = vmatpush1.bf16.msra.mxu0 %v346
        %357 = vmatprep.subr.bf16.mxu0 0
        %358 = vmatpush1.bf16.msra.mxu0 %v345
        %359 = vmatprep.subr.bf16.mxu0 0
        %360 = vmatpush1.bf16.msra.mxu0 %v344
        %361 = vmatprep.subr.bf16.mxu0 0
        %362 = vmatpush1.bf16.msra.mxu0 %v343
        %363 = vmatprep.subr.bf16.mxu0 0
        %364 = vmatpush1.bf16.msra.mxu0 %v342
        %365 = vmatprep.subr.bf16.mxu0 0
        %366 = vmatpush1.bf16.msra.mxu0 %v341
        %367 = vmatprep.subr.bf16.mxu0 0
        %368 = vmatpush1.bf16.msra.mxu0 %v340
        %369 = vmatprep.subr.bf16.mxu0 0
        %370 = vmatpush1.bf16.msra.mxu0 %v339
        %371 = vmatprep.subr.bf16.mxu0 0
        %372 = vmatpush2.bf16.msra.mxu0 0
        %373 = vmatprep.subr.bf16.mxu0 0
        %374 = vmatpush2.bf16.msra.mxu0 0
        %375 = vmatprep.subr.bf16.mxu0 0
        %376 = vmatpush2.bf16.msra.mxu0 0
        %377 = vmatprep.subr.bf16.mxu0 0
        %378 = vmatpush2.bf16.msra.mxu0 0
        %379 = vmatprep.subr.bf16.mxu0 0
        %380 = vmatpush2.bf16.msra.mxu0 0
        %381 = vmatprep.subr.bf16.mxu0 0
        %382 = vmatpush2.bf16.msra.mxu0 0
        %383 = vmatprep.subr.bf16.mxu0 0
        %384 = vmatpush2.bf16.msra.mxu0 0
        %385 = vmatprep.subr.bf16.mxu0 0
        %386 = vmatpush2.bf16.msra.mxu0 0
        %387 = vmatprep.mubr.bf16.mxu0 0
        %388 = vmatmul.mubr.bf16.gmra.mxu0 %v305
        %v389 = vpop.f32.mrf.mxu0
        %v390 = vadd.f32 %v283, %v389
        %v391 = vpop.f32.mrf.mxu0
        %v392 = vpop.f32.mrf.mxu0
        %v393 = vadd.f32 %v283, %v392
        %v394 = vpop.f32.mrf.mxu0
        %395 = vdwg.mxu0
        %v398 = vcombine.high %v390, %v390
        %v399 = vcombine.high %v393, %v393
        %v402 = vpack.c.bf16 %v390, %v390
        %v403 = vpack.c.bf16 %v398, %v398
        %v404 = vpack.c.bf16 %v393, %v393
        %v405 = vpack.c.bf16 %v399, %v399
        %v410 = vunpack.c.l.b16 %v402
        %v411 = vunpack.c.l.b16 %v403
        %v412 = vunpack.c.l.b16 %v404
        %v413 = vunpack.c.l.b16 %v405
        %v414 = vpack.c.b16 %v410, %v410
        %v415 = vpack.c.b16 %v411, %v411
        %v416 = vpack.c.b16 %v412, %v412
        %v417 = vpack.c.b16 %v413, %v413
        %v419 = vshrl.u32 %v414, 16
        %v421 = vrot.slane %v419, 7
        %v422 = vshll.u32 %v414, 16
        %v424 = vor.u32 %v421, %v422
        %v426 = vshrl.u32 %v415, 16
        %v428 = vrot.slane %v426, 7
        %v429 = vshll.u32 %v415, 16
        %v431 = vor.u32 %v428, %v429
        %v433 = vshrl.u32 %v416, 16
        %v435 = vrot.slane %v433, 7
        %v436 = vshll.u32 %v416, 16
        %v438 = vor.u32 %v435, %v436
        %v440 = vshrl.u32 %v417, 16
        %v442 = vrot.slane %v440, 7
        %v443 = vshll.u32 %v417, 16
        %v445 = vor.u32 %v442, %v443
        %s450 = scalar_lea.vmem [#allocation2], 4
        %vm451 = vcmask 518144
        %vm452 = vsmask.f32 2306
        %vm453 = vmand %vm451, %vm452
        %v454 = vld [vmem:[%s450] sm:$0x7]
        %v455 = vsel %vm453, %v424, %v454
        %456 = vst [vmem:[%s450] sm:$0x7] %v455
        %v457 = vld [vmem:[%s450 + $0x4] sm:$0x7]
        %v458 = vsel %vm453, %v431, %v457
        %459 = vst [vmem:[%s450 + $0x4] sm:$0x7] %v458
        %v460 = vld [vmem:[%s450 + $0x8] sm:$0x7]
        %v461 = vsel %vm453, %v438, %v460
        %462 = vst [vmem:[%s450 + $0x8] sm:$0x7] %v461
        %v463 = vld [vmem:[%s450 + $0xc] sm:$0x7]
        %v464 = vsel %vm453, %v445, %v463
        %465 = vst [vmem:[%s450 + $0xc] sm:$0x7] %v464
        %v466 = vld [vmem:[#allocation2] sm:$0x3]
        %v467 = vld [vmem:[#allocation2 + $0x4] sm:$0x3]
        %v468 = vld [vmem:[#allocation2 + $0x8] sm:$0x3]
        %v469 = vld [vmem:[#allocation2 + $0xc] sm:$0x3]
        %v470 = vld [vmem:[#allocation2 + $0x10] sm:$0x3]
        %v471 = vld [vmem:[#allocation2 + $0x14] sm:$0x3]
        %v472 = vld [vmem:[#allocation3] sm:$0xff]
        %v473 = vld [vmem:[#allocation3 + $0x8] sm:$0xff]
        %v474 = vld [vmem:[#allocation3 + $0x10] sm:$0xff]
        %v475 = vld [vmem:[#allocation3 + $0x18] sm:$0xff]
        %v476 = vld [vmem:[#allocation3 + $0x20] sm:$0xff]
        %v477 = vld [vmem:[#allocation3 + $0x28] sm:$0xff]
        %v478 = vld [vmem:[#allocation3 + $0x30] sm:$0xff]
        %v479 = vld [vmem:[#allocation3 + $0x38] sm:$0xff]
        %v486 = vcombine.low %v466, %v467
        %v487 = vcombine.low %v468, %v469
        %v489 = vunpack.c.l.s4 1983009808
        %v490 = vunpack.c.0.s8 %v489
        %v491 = vlaneseq
        %v492 = vshrl.u32 %v491, 7
        %v493 = vsub.s32 %v490, %v492
        %v494 = vrot.slane %v486, %v493
        %v496 = vunpack.c.l.s4 1983009808
        %v497 = vunpack.c.0.s8 %v496
        %v498 = vlaneseq
        %v499 = vshrl.u32 %v498, 7
        %v500 = vsub.s32 %v497, %v499
        %v501 = vrot.slane %v487, %v500
        %v502 = vcombine.low %v494, %v501
        %v503 = vcombine.low %v470, %v471
        %v505 = vunpack.c.l.s4 1983009808
        %v506 = vunpack.c.0.s8 %v505
        %v507 = vlaneseq
        %v508 = vshrl.u32 %v507, 7
        %v509 = vsub.s32 %v506, %v508
        %v510 = vrot.slane %v503, %v509
        %v519 = vunpack.c.l.b16 %v472
        %v520 = vunpack.c.h.b16 %v472
        %v521 = vunpack.c.l.b16 %v473
        %v522 = vunpack.c.h.b16 %v473
        %v523 = vunpack.c.l.b16 %v474
        %v524 = vunpack.c.h.b16 %v474
        %v525 = vunpack.c.l.b16 %v475
        %v526 = vunpack.c.h.b16 %v475
        %v527 = vunpack.c.l.b16 %v476
        %v528 = vunpack.c.h.b16 %v476
        %v529 = vunpack.c.l.b16 %v477
        %v530 = vunpack.c.h.b16 %v477
        %v531 = vunpack.c.l.b16 %v478
        %v532 = vunpack.c.h.b16 %v478
        %v533 = vunpack.c.l.b16 %v479
        %v534 = vunpack.c.h.b16 %v479
        %v535 = vpack.c.b16 %v521, %v519
        %v536 = vpack.c.b16 %v522, %v520
        %v537 = vpack.c.b16 %v525, %v523
        %v538 = vpack.c.b16 %v526, %v524
        %v539 = vpack.c.b16 %v529, %v527
        %v540 = vpack.c.b16 %v530, %v528
        %v541 = vpack.c.b16 %v533, %v531
        %v542 = vpack.c.b16 %v534, %v532
        %vm551 = vcmask 523264
        %v553 = vsel %vm551, %v502, 0
        %v556 = vsel %vm551, %v510, 0
        %558 = vmatprep.subr.bf16.mxu0 0
        %559 = vmatpush1.bf16.msra.mxu0 0
        %560 = vmatprep.subr.bf16.mxu0 0
        %561 = vmatpush1.bf16.msra.mxu0 0
        %562 = vmatprep.subr.bf16.mxu0 0
        %563 = vmatpush1.bf16.msra.mxu0 0
        %564 = vmatprep.subr.bf16.mxu0 0
        %565 = vmatpush1.bf16.msra.mxu0 0
        %566 = vmatprep.subr.bf16.mxu0 %v542
        %567 = vmatpush1.bf16.msra.mxu0 %v541
        %568 = vmatprep.subr.bf16.mxu0 %v540
        %569 = vmatpush1.bf16.msra.mxu0 %v539
        %570 = vmatprep.subr.bf16.mxu0 %v538
        %571 = vmatpush1.bf16.msra.mxu0 %v537
        %572 = vmatprep.subr.bf16.mxu0 %v536
        %573 = vmatpush1.bf16.msra.mxu0 %v535
        %574 = vmatprep.subr.bf16.mxu0 0
        %575 = vmatpush2.bf16.msra.mxu0 0
        %576 = vmatprep.subr.bf16.mxu0 0
        %577 = vmatpush2.bf16.msra.mxu0 0
        %578 = vmatprep.subr.bf16.mxu0 0
        %579 = vmatpush2.bf16.msra.mxu0 0
        %580 = vmatprep.subr.bf16.mxu0 0
        %581 = vmatpush2.bf16.msra.mxu0 0
        %582 = vmatprep.subr.bf16.mxu0 0
        %583 = vmatpush2.bf16.msra.mxu0 0
        %584 = vmatprep.subr.bf16.mxu0 0
        %585 = vmatpush2.bf16.msra.mxu0 0
        %586 = vmatprep.subr.bf16.mxu0 0
        %587 = vmatpush2.bf16.msra.mxu0 0
        %588 = vmatprep.subr.bf16.mxu0 0
        %589 = vmatpush2.bf16.msra.mxu0 0
        %590 = vmatprep.mubr.bf16.mxu0 0
        %591 = vmatmul.mubr.bf16.gmra.mxu0 %v553
        %v592 = vpop.f32.mrf.mxu0
        %v593 = vadd.f32 0.0, %v592
        %v594 = vpop.f32.mrf.mxu0
        %v595 = vadd.f32 0.0, %v594
        %v596 = vpop.f32.mrf.mxu0
        %v597 = vadd.f32 0.0, %v596
        %v598 = vpop.f32.mrf.mxu0
        %v599 = vadd.f32 0.0, %v598
        %600 = vmatprep.mubr.bf16.mxu0 0
        %601 = vmatmul.mubr.bf16.gmra.mxu0 %v556
        %v602 = vpop.f32.mrf.mxu0
        %v603 = vadd.f32 0.0, %v602
        %v604 = vpop.f32.mrf.mxu0
        %v605 = vadd.f32 0.0, %v604
        %v606 = vpop.f32.mrf.mxu0
        %v607 = vpop.f32.mrf.mxu0
        %608 = vdwg.mxu0
        %v615 = vcombine.low %v593, %v595
        %v616 = vcombine.high %v593, %v595
        %v617 = vcombine.low %v597, %v599
        %v618 = vcombine.high %v597, %v599
        %v619 = vcombine.low %v603, %v605
        %v620 = vcombine.high %v603, %v605
        %625 = vrot.lane.b32.xlu0 %v616, 64
        %v626 = vpop.permute.xlu0 %625
        %627 = vrot.lane.b32.xlu0 %v617, 64
        %v628 = vpop.permute.xlu0 %627
        %629 = vrot.lane.b32.xlu0 %v618, 64
        %v630 = vpop.permute.xlu0 %629
        %631 = vrot.lane.b32.xlu0 %v619, 64
        %v632 = vpop.permute.xlu0 %631
        %v637 = vadd.f32 %v615, %v626
        %v638 = vadd.f32 %v616, %v628
        %v639 = vadd.f32 %v617, %v630
        %v640 = vadd.f32 %v618, %v632
        %v641 = vrot.slane %v617, 4
        %v642 = vrot.slane %v618, 4
        %v643 = vrot.slane %v619, 4
        %v644 = vrot.slane %v620, 4
        %v649 = vadd.f32 %v637, %v641
        %v650 = vadd.f32 %v638, %v642
        %v651 = vadd.f32 %v639, %v643
        %v652 = vadd.f32 %v640, %v644
        %v653 = vld [vmem:[#allocation2] sm:$0x7]
        %v654 = vld [vmem:[#allocation2 + $0x4] sm:$0x7]
        %v655 = vld [vmem:[#allocation2 + $0x8] sm:$0x7]
        %v656 = vld [vmem:[#allocation2 + $0xc] sm:$0x7]
        %v657 = vld [vmem:[#allocation2 + $0x10] sm:$0x7]
        %v658 = vld [vmem:[#allocation2 + $0x14] sm:$0x7]
        %v666 = vunpack.c.l.s4 1983009808
        %v667 = vunpack.c.0.s8 %v666
        %v668 = vlaneseq
        %v669 = vshrl.u32 %v668, 7
        %v670 = vsub.s32 %v667, %v669
        %v671 = vrot.slane %v653, %v670
        %v672 = vcombine.high %v671, %v671
        %v674 = vunpack.c.l.s4 1983009808
        %v675 = vunpack.c.0.s8 %v674
        %v676 = vlaneseq
        %v677 = vshrl.u32 %v676, 7
        %v678 = vsub.s32 %v675, %v677
        %v679 = vrot.slane %v654, %v678
        %v680 = vcombine.high %v679, %v679
        %v682 = vunpack.c.l.s4 1983009808
        %v683 = vunpack.c.0.s8 %v682
        %v684 = vlaneseq
        %v685 = vshrl.u32 %v684, 7
        %v686 = vsub.s32 %v683, %v685
        %v687 = vrot.slane %v655, %v686
        %v688 = vcombine.high %v687, %v687
        %v690 = vunpack.c.l.s4 1983009808
        %v691 = vunpack.c.0.s8 %v690
        %v692 = vlaneseq
        %v693 = vshrl.u32 %v692, 7
        %v694 = vsub.s32 %v691, %v693
        %v695 = vrot.slane %v656, %v694
        %v696 = vcombine.high %v695, %v695
        %v698 = vunpack.c.l.s4 1983009808
        %v699 = vunpack.c.0.s8 %v698
        %v700 = vlaneseq
        %v701 = vshrl.u32 %v700, 7
        %v702 = vsub.s32 %v699, %v701
        %v703 = vrot.slane %v657, %v702
        %v704 = vcombine.high %v703, %v703
        %v706 = vunpack.c.l.s4 1983009808
        %v707 = vunpack.c.0.s8 %v706
        %v708 = vlaneseq
        %v709 = vshrl.u32 %v708, 7
        %v710 = vsub.s32 %v707, %v709
        %v711 = vrot.slane %v658, %v710
        %v712 = vcombine.high %v711, %v711
        %vm713 = vsmask.f32 1280
        %vm714 = vsmask.f32 3336
        %vm715 = vmor %vm713, %vm714
        %vm716 = vsmask.f32 5392
        %vm717 = vmor %vm715, %vm716
        %vm718 = vsmask.f32 7448
        %vm719 = vmor %vm717, %vm718
        %v721 = vshrl.u32 %v671, 16
        %v723 = vrot.slane %v721, 6
        %v724 = vshll.u32 %v671, 16
        %v726 = vrot.slane %v724, 7
        %v727 = vor.u32 %v723, %v726
        %v728 = vrot.slane %v727, 2
        %v730 = vshll.u32 %v672, 16
        %v732 = vrot.slane %v730, 7
        %v733 = vsel %vm719, %v728, %v732
        %v735 = vshrl.u32 %v679, 16
        %v737 = vrot.slane %v735, 6
        %v738 = vshll.u32 %v679, 16
        %v740 = vrot.slane %v738, 7
        %v741 = vor.u32 %v737, %v740
        %v742 = vrot.slane %v741, 2
        %v744 = vshll.u32 %v680, 16
        %v746 = vrot.slane %v744, 7
        %v747 = vsel %vm719, %v742, %v746
        %v749 = vshrl.u32 %v687, 16
        %v751 = vrot.slane %v749, 6
        %v752 = vshll.u32 %v687, 16
        %v754 = vrot.slane %v752, 7
        %v755 = vor.u32 %v751, %v754
        %v756 = vrot.slane %v755, 2
        %v758 = vshll.u32 %v688, 16
        %v760 = vrot.slane %v758, 7
        %v761 = vsel %vm719, %v756, %v760
        %v763 = vshrl.u32 %v695, 16
        %v765 = vrot.slane %v763, 6
        %v766 = vshll.u32 %v695, 16
        %v768 = vrot.slane %v766, 7
        %v769 = vor.u32 %v765, %v768
        %v770 = vrot.slane %v769, 2
        %v772 = vshll.u32 %v696, 16
        %v774 = vrot.slane %v772, 7
        %v775 = vsel %vm719, %v770, %v774
        %v777 = vshrl.u32 %v703, 16
        %v779 = vrot.slane %v777, 6
        %v780 = vshll.u32 %v703, 16
        %v782 = vrot.slane %v780, 7
        %v783 = vor.u32 %v779, %v782
        %v784 = vrot.slane %v783, 2
        %v786 = vshll.u32 %v704, 16
        %v788 = vrot.slane %v786, 7
        %v789 = vsel %vm719, %v784, %v788
        %v791 = vshrl.u32 %v711, 16
        %v793 = vrot.slane %v791, 6
        %v794 = vshll.u32 %v711, 16
        %v796 = vrot.slane %v794, 7
        %v797 = vor.u32 %v793, %v796
        %v798 = vrot.slane %v797, 2
        %v800 = vshll.u32 %v712, 16
        %v802 = vrot.slane %v800, 7
        %v803 = vsel %vm719, %v798, %v802
        %s804 = scalar_lea.vmem [#allocation3], 64
        %v805 = vld [vmem:[%s804] sm:$0xff]
        %v806 = vld [vmem:[%s804 + $0x8] sm:$0xff]
        %v807 = vld [vmem:[%s804 + $0x10] sm:$0xff]
        %v808 = vld [vmem:[%s804 + $0x18] sm:$0xff]
        %v809 = vld [vmem:[%s804 + $0x20] sm:$0xff]
        %v810 = vld [vmem:[%s804 + $0x28] sm:$0xff]
        %v811 = vld [vmem:[%s804 + $0x30] sm:$0xff]
        %v812 = vld [vmem:[%s804 + $0x38] sm:$0xff]
        %v813 = vcombine.low %v733, %v747
        %v814 = vcombine.low %v761, %v775
        %v816 = vunpack.c.l.s4 1983009808
        %v817 = vunpack.c.0.s8 %v816
        %v818 = vlaneseq
        %v819 = vshrl.u32 %v818, 7
        %v820 = vsub.s32 %v817, %v819
        %v821 = vrot.slane %v813, %v820
        %v823 = vunpack.c.l.s4 1983009808
        %v824 = vunpack.c.0.s8 %v823
        %v825 = vlaneseq
        %v826 = vshrl.u32 %v825, 7
        %v827 = vsub.s32 %v824, %v826
        %v828 = vrot.slane %v814, %v827
        %v829 = vcombine.low %v821, %v828
        %v830 = vcombine.low %v789, %v803
        %v832 = vunpack.c.l.s4 1983009808
        %v833 = vunpack.c.0.s8 %v832
        %v834 = vlaneseq
        %v835 = vshrl.u32 %v834, 7
        %v836 = vsub.s32 %v833, %v835
        %v837 = vrot.slane %v830, %v836
        %v846 = vunpack.c.l.b16 %v805
        %v847 = vunpack.c.h.b16 %v805
        %v848 = vunpack.c.l.b16 %v806
        %v849 = vunpack.c.h.b16 %v806
        %v850 = vunpack.c.l.b16 %v807
        %v851 = vunpack.c.h.b16 %v807
        %v852 = vunpack.c.l.b16 %v808
        %v853 = vunpack.c.h.b16 %v808
        %v854 = vunpack.c.l.b16 %v809
        %v855 = vunpack.c.h.b16 %v809
        %v856 = vunpack.c.l.b16 %v810
        %v857 = vunpack.c.h.b16 %v810
        %v858 = vunpack.c.l.b16 %v811
        %v859 = vunpack.c.h.b16 %v811
        %v860 = vunpack.c.l.b16 %v812
        %v861 = vunpack.c.h.b16 %v812
        %v862 = vpack.c.b16 %v848, %v846
        %v863 = vpack.c.b16 %v849, %v847
        %v864 = vpack.c.b16 %v852, %v850
        %v865 = vpack.c.b16 %v853, %v851
        %v866 = vpack.c.b16 %v856, %v854
        %v867 = vpack.c.b16 %v857, %v855
        %v868 = vpack.c.b16 %v860, %v858
        %v869 = vpack.c.b16 %v861, %v859
        %v879 = vsel %vm551, %v829, 0
        %v882 = vsel %vm551, %v837, 0
        %884 = vmatprep.subr.bf16.mxu0 0
        %885 = vmatpush1.bf16.msra.mxu0 0
        %886 = vmatprep.subr.bf16.mxu0 0
        %887 = vmatpush1.bf16.msra.mxu0 0
        %888 = vmatprep.subr.bf16.mxu0 0
        %889 = vmatpush1.bf16.msra.mxu0 0
        %890 = vmatprep.subr.bf16.mxu0 0
        %891 = vmatpush1.bf16.msra.mxu0 0
        %892 = vmatprep.subr.bf16.mxu0 %v869
        %893 = vmatpush1.bf16.msra.mxu0 %v868
        %894 = vmatprep.subr.bf16.mxu0 %v867
        %895 = vmatpush1.bf16.msra.mxu0 %v866
        %896 = vmatprep.subr.bf16.mxu0 %v865
        %897 = vmatpush1.bf16.msra.mxu0 %v864
        %898 = vmatprep.subr.bf16.mxu0 %v863
        %899 = vmatpush1.bf16.msra.mxu0 %v862
        %900 = vmatprep.subr.bf16.mxu0 0
        %901 = vmatpush2.bf16.msra.mxu0 0
        %902 = vmatprep.subr.bf16.mxu0 0
        %903 = vmatpush2.bf16.msra.mxu0 0
        %904 = vmatprep.subr.bf16.mxu0 0
        %905 = vmatpush2.bf16.msra.mxu0 0
        %906 = vmatprep.subr.bf16.mxu0 0
        %907 = vmatpush2.bf16.msra.mxu0 0
        %908 = vmatprep.subr.bf16.mxu0 0
        %909 = vmatpush2.bf16.msra.mxu0 0
        %910 = vmatprep.subr.bf16.mxu0 0
        %911 = vmatpush2.bf16.msra.mxu0 0
        %912 = vmatprep.subr.bf16.mxu0 0
        %913 = vmatpush2.bf16.msra.mxu0 0
        %914 = vmatprep.subr.bf16.mxu0 0
        %915 = vmatpush2.bf16.msra.mxu0 0
        %916 = vmatprep.mubr.bf16.mxu0 0
        %917 = vmatmul.mubr.bf16.gmra.mxu0 %v879
        %v918 = vpop.f32.mrf.mxu0
        %v919 = vadd.f32 0.0, %v918
        %v920 = vpop.f32.mrf.mxu0
        %v921 = vadd.f32 0.0, %v920
        %v922 = vpop.f32.mrf.mxu0
        %v923 = vadd.f32 0.0, %v922
        %v924 = vpop.f32.mrf.mxu0
        %v925 = vadd.f32 0.0, %v924
        %926 = vmatprep.mubr.bf16.mxu0 0
        %927 = vmatmul.mubr.bf16.gmra.mxu0 %v882
        %v928 = vpop.f32.mrf.mxu0
        %v929 = vadd.f32 0.0, %v928
        %v930 = vpop.f32.mrf.mxu0
        %v931 = vadd.f32 0.0, %v930
        %v932 = vpop.f32.mrf.mxu0
        %v933 = vpop.f32.mrf.mxu0
        %934 = vdwg.mxu0
        %v941 = vcombine.low %v919, %v921
        %v942 = vcombine.high %v919, %v921
        %v943 = vcombine.low %v923, %v925
        %v944 = vcombine.high %v923, %v925
        %v945 = vcombine.low %v929, %v931
        %v946 = vcombine.high %v929, %v931
        %v951 = vadd.f32 %v649, %v941
        %v952 = vadd.f32 %v650, %v942
        %v953 = vadd.f32 %v651, %v943
        %v954 = vadd.f32 %v652, %v944
        %955 = vrot.lane.b32.xlu0 %v942, 64
        %v956 = vpop.permute.xlu0 %955
        %957 = vrot.lane.b32.xlu0 %v943, 64
        %v958 = vpop.permute.xlu0 %957
        %959 = vrot.lane.b32.xlu0 %v944, 64
        %v960 = vpop.permute.xlu0 %959
        %961 = vrot.lane.b32.xlu0 %v945, 64
        %v962 = vpop.permute.xlu0 %961
        %v967 = vadd.f32 %v951, %v956
        %v968 = vadd.f32 %v952, %v958
        %v969 = vadd.f32 %v953, %v960
        %v970 = vadd.f32 %v954, %v962
        %v971 = vrot.slane %v943, 4
        %v972 = vrot.slane %v944, 4
        %v973 = vrot.slane %v945, 4
        %v974 = vrot.slane %v946, 4
        %v979 = vadd.f32 %v967, %v971
        %v980 = vadd.f32 %v968, %v972
        %v981 = vadd.f32 %v969, %v973
        %v982 = vadd.f32 %v970, %v974
        %v983 = vld [vmem:[#allocation2] sm:$0x6]
        %v984 = vld [vmem:[#allocation2 + $0x4] sm:$0x6]
        %v985 = vld [vmem:[#allocation2 + $0x8] sm:$0x6]
        %v986 = vld [vmem:[#allocation2 + $0xc] sm:$0x6]
        %v987 = vld [vmem:[#allocation2 + $0x10] sm:$0x6]
        %v988 = vld [vmem:[#allocation2 + $0x14] sm:$0x6]
        %v996 = vunpack.c.l.s4 1983009808
        %v997 = vunpack.c.0.s8 %v996
        %v998 = vlaneseq
        %v999 = vshrl.u32 %v998, 7
        %v1000 = vsub.s32 %v997, %v999
        %v1001 = vrot.slane %v983, %v1000
        %v1002 = vcombine.high %v1001, %v1001
        %v1004 = vunpack.c.l.s4 1983009808
        %v1005 = vunpack.c.0.s8 %v1004
        %v1006 = vlaneseq
        %v1007 = vshrl.u32 %v1006, 7
        %v1008 = vsub.s32 %v1005, %v1007
        %v1009 = vrot.slane %v984, %v1008
        %v1010 = vcombine.high %v1009, %v1009
        %v1012 = vunpack.c.l.s4 1983009808
        %v1013 = vunpack.c.0.s8 %v1012
        %v1014 = vlaneseq
        %v1015 = vshrl.u32 %v1014, 7
        %v1016 = vsub.s32 %v1013, %v1015
        %v1017 = vrot.slane %v985, %v1016
        %v1018 = vcombine.high %v1017, %v1017
        %v1020 = vunpack.c.l.s4 1983009808
        %v1021 = vunpack.c.0.s8 %v1020
        %v1022 = vlaneseq
        %v1023 = vshrl.u32 %v1022, 7
        %v1024 = vsub.s32 %v1021, %v1023
        %v1025 = vrot.slane %v986, %v1024
        %v1026 = vcombine.high %v1025, %v1025
        %v1028 = vunpack.c.l.s4 1983009808
        %v1029 = vunpack.c.0.s8 %v1028
        %v1030 = vlaneseq
        %v1031 = vshrl.u32 %v1030, 7
        %v1032 = vsub.s32 %v1029, %v1031
        %v1033 = vrot.slane %v987, %v1032
        %v1034 = vcombine.high %v1033, %v1033
        %v1036 = vunpack.c.l.s4 1983009808
        %v1037 = vunpack.c.0.s8 %v1036
        %v1038 = vlaneseq
        %v1039 = vshrl.u32 %v1038, 7
        %v1040 = vsub.s32 %v1037, %v1039
        %v1041 = vrot.slane %v988, %v1040
        %v1042 = vcombine.high %v1041, %v1041
        %vm1043 = vcmask 1040384
        %vm1044 = vcmask 1042434
        %vm1045 = vmor %vm1043, %vm1044
        %vm1046 = vcmask 1044484
        %vm1047 = vmor %vm1045, %vm1046
        %vm1048 = vcmask 1046534
        %vm1049 = vmor %vm1047, %vm1048
        %v1050 = vrot.slane %v1001, 7
        %v1051 = vrot.slane %v1050, 2
        %v1052 = vrot.slane %v1002, 7
        %v1053 = vsel %vm1049, %v1051, %v1052
        %v1054 = vrot.slane %v1009, 7
        %v1055 = vrot.slane %v1054, 2
        %v1056 = vrot.slane %v1010, 7
        %v1057 = vsel %vm1049, %v1055, %v1056
        %v1058 = vrot.slane %v1017, 7
        %v1059 = vrot.slane %v1058, 2
        %v1060 = vrot.slane %v1018, 7
        %v1061 = vsel %vm1049, %v1059, %v1060
        %v1062 = vrot.slane %v1025, 7
        %v1063 = vrot.slane %v1062, 2
        %v1064 = vrot.slane %v1026, 7
        %v1065 = vsel %vm1049, %v1063, %v1064
        %v1066 = vrot.slane %v1033, 7
        %v1067 = vrot.slane %v1066, 2
        %v1068 = vrot.slane %v1034, 7
        %v1069 = vsel %vm1049, %v1067, %v1068
        %v1070 = vrot.slane %v1041, 7
        %v1071 = vrot.slane %v1070, 2
        %v1072 = vrot.slane %v1042, 7
        %v1073 = vsel %vm1049, %v1071, %v1072
        %s1074 = scalar_lea.vmem [#allocation3], 128
        %v1075 = vld [vmem:[%s1074] sm:$0xff]
        %v1076 = vld [vmem:[%s1074 + $0x8] sm:$0xff]
        %v1077 = vld [vmem:[%s1074 + $0x10] sm:$0xff]
        %v1078 = vld [vmem:[%s1074 + $0x18] sm:$0xff]
        %v1079 = vld [vmem:[%s1074 + $0x20] sm:$0xff]
        %v1080 = vld [vmem:[%s1074 + $0x28] sm:$0xff]
        %v1081 = vld [vmem:[%s1074 + $0x30] sm:$0xff]
        %v1082 = vld [vmem:[%s1074 + $0x38] sm:$0xff]
        %v1083 = vcombine.low %v1053, %v1057
        %v1084 = vcombine.low %v1061, %v1065
        %v1086 = vunpack.c.l.s4 1983009808
        %v1087 = vunpack.c.0.s8 %v1086
        %v1088 = vlaneseq
        %v1089 = vshrl.u32 %v1088, 7
        %v1090 = vsub.s32 %v1087, %v1089
        %v1091 = vrot.slane %v1083, %v1090
        %v1093 = vunpack.c.l.s4 1983009808
        %v1094 = vunpack.c.0.s8 %v1093
        %v1095 = vlaneseq
        %v1096 = vshrl.u32 %v1095, 7
        %v1097 = vsub.s32 %v1094, %v1096
        %v1098 = vrot.slane %v1084, %v1097
        %v1099 = vcombine.low %v1091, %v1098
        %v1100 = vcombine.low %v1069, %v1073
        %v1102 = vunpack.c.l.s4 1983009808
        %v1103 = vunpack.c.0.s8 %v1102
        %v1104 = vlaneseq
        %v1105 = vshrl.u32 %v1104, 7
        %v1106 = vsub.s32 %v1103, %v1105
        %v1107 = vrot.slane %v1100, %v1106
        %v1116 = vunpack.c.l.b16 %v1075
        %v1117 = vunpack.c.h.b16 %v1075
        %v1118 = vunpack.c.l.b16 %v1076
        %v1119 = vunpack.c.h.b16 %v1076
        %v1120 = vunpack.c.l.b16 %v1077
        %v1121 = vunpack.c.h.b16 %v1077
        %v1122 = vunpack.c.l.b16 %v1078
        %v1123 = vunpack.c.h.b16 %v1078
        %v1124 = vunpack.c.l.b16 %v1079
        %v1125 = vunpack.c.h.b16 %v1079
        %v1126 = vunpack.c.l.b16 %v1080
        %v1127 = vunpack.c.h.b16 %v1080
        %v1128 = vunpack.c.l.b16 %v1081
        %v1129 = vunpack.c.h.b16 %v1081
        %v1130 = vunpack.c.l.b16 %v1082
        %v1131 = vunpack.c.h.b16 %v1082
        %v1132 = vpack.c.b16 %v1118, %v1116
        %v1133 = vpack.c.b16 %v1119, %v1117
        %v1134 = vpack.c.b16 %v1122, %v1120
        %v1135 = vpack.c.b16 %v1123, %v1121
        %v1136 = vpack.c.b16 %v1126, %v1124
        %v1137 = vpack.c.b16 %v1127, %v1125
        %v1138 = vpack.c.b16 %v1130, %v1128
        %v1139 = vpack.c.b16 %v1131, %v1129
        %v1149 = vsel %vm551, %v1099, 0
        %v1152 = vsel %vm551, %v1107, 0
        %1154 = vmatprep.subr.bf16.mxu0 0
        %1155 = vmatpush1.bf16.msra.mxu0 0
        %1156 = vmatprep.subr.bf16.mxu0 0
        %1157 = vmatpush1.bf16.msra.mxu0 0
        %1158 = vmatprep.subr.bf16.mxu0 0
        %1159 = vmatpush1.bf16.msra.mxu0 0
        %1160 = vmatprep.subr.bf16.mxu0 0
        %1161 = vmatpush1.bf16.msra.mxu0 0
        %1162 = vmatprep.subr.bf16.mxu0 %v1139
        %1163 = vmatpush1.bf16.msra.mxu0 %v1138
        %1164 = vmatprep.subr.bf16.mxu0 %v1137
        %1165 = vmatpush1.bf16.msra.mxu0 %v1136
        %1166 = vmatprep.subr.bf16.mxu0 %v1135
        %1167 = vmatpush1.bf16.msra.mxu0 %v1134
        %1168 = vmatprep.subr.bf16.mxu0 %v1133
        %1169 = vmatpush1.bf16.msra.mxu0 %v1132
        %1170 = vmatprep.subr.bf16.mxu0 0
        %1171 = vmatpush2.bf16.msra.mxu0 0
        %1172 = vmatprep.subr.bf16.mxu0 0
        %1173 = vmatpush2.bf16.msra.mxu0 0
        %1174 = vmatprep.subr.bf16.mxu0 0
        %1175 = vmatpush2.bf16.msra.mxu0 0
        %1176 = vmatprep.subr.bf16.mxu0 0
        %1177 = vmatpush2.bf16.msra.mxu0 0
        %1178 = vmatprep.subr.bf16.mxu0 0
        %1179 = vmatpush2.bf16.msra.mxu0 0
        %1180 = vmatprep.subr.bf16.mxu0 0
        %1181 = vmatpush2.bf16.msra.mxu0 0
        %1182 = vmatprep.subr.bf16.mxu0 0
        %1183 = vmatpush2.bf16.msra.mxu0 0
        %1184 = vmatprep.subr.bf16.mxu0 0
        %1185 = vmatpush2.bf16.msra.mxu0 0
        %1186 = vmatprep.mubr.bf16.mxu0 0
        %1187 = vmatmul.mubr.bf16.gmra.mxu0 %v1149
        %v1188 = vpop.f32.mrf.mxu0
        %v1189 = vadd.f32 0.0, %v1188
        %v1190 = vpop.f32.mrf.mxu0
        %v1191 = vadd.f32 0.0, %v1190
        %v1192 = vpop.f32.mrf.mxu0
        %v1193 = vadd.f32 0.0, %v1192
        %v1194 = vpop.f32.mrf.mxu0
        %v1195 = vadd.f32 0.0, %v1194
        %1196 = vmatprep.mubr.bf16.mxu0 0
        %1197 = vmatmul.mubr.bf16.gmra.mxu0 %v1152
        %v1198 = vpop.f32.mrf.mxu0
        %v1199 = vadd.f32 0.0, %v1198
        %v1200 = vpop.f32.mrf.mxu0
        %v1201 = vadd.f32 0.0, %v1200
        %v1202 = vpop.f32.mrf.mxu0
        %v1203 = vpop.f32.mrf.mxu0
        %1204 = vdwg.mxu0
        %v1211 = vcombine.low %v1189, %v1191
        %v1212 = vcombine.high %v1189, %v1191
        %v1213 = vcombine.low %v1193, %v1195
        %v1214 = vcombine.high %v1193, %v1195
        %v1215 = vcombine.low %v1199, %v1201
        %v1216 = vcombine.high %v1199, %v1201
        %v1221 = vadd.f32 %v979, %v1211
        %v1222 = vadd.f32 %v980, %v1212
        %v1223 = vadd.f32 %v981, %v1213
        %v1224 = vadd.f32 %v982, %v1214
        %1225 = vrot.lane.b32.xlu0 %v1212, 64
        %v1226 = vpop.permute.xlu0 %1225
        %1227 = vrot.lane.b32.xlu0 %v1213, 64
        %v1228 = vpop.permute.xlu0 %1227
        %1229 = vrot.lane.b32.xlu0 %v1214, 64
        %v1230 = vpop.permute.xlu0 %1229
        %1231 = vrot.lane.b32.xlu0 %v1215, 64
        %v1232 = vpop.permute.xlu0 %1231
        %v1237 = vadd.f32 %v1221, %v1226
        %v1238 = vadd.f32 %v1222, %v1228
        %v1239 = vadd.f32 %v1223, %v1230
        %v1240 = vadd.f32 %v1224, %v1232
        %v1241 = vrot.slane %v1213, 4
        %v1242 = vrot.slane %v1214, 4
        %v1243 = vrot.slane %v1215, 4
        %v1244 = vrot.slane %v1216, 4
        %v1249 = vadd.f32 %v1237, %v1241
        %v1250 = vadd.f32 %v1238, %v1242
        %v1251 = vadd.f32 %v1239, %v1243
        %v1252 = vadd.f32 %v1240, %v1244
        %v1253 = vmax.f32 %v1249, 0.0
        %v1254 = vmax.f32 %v1250, 0.0
        %v1255 = vmax.f32 %v1251, 0.0
        %v1256 = vmax.f32 %v1252, 0.0
        %v1257 = vpack.c.bf16 %v1253, %v1253
        %v1258 = vpack.c.bf16 %v1254, %v1254
        %v1259 = vpack.c.bf16 %v1255, %v1255
        %v1260 = vpack.c.bf16 %v1256, %v1256
        %vm1261 = vcmask 517120
        %1262 = vst.msk [vmem:[%s205] sm:$0x3] %vm1261, %v1257
        %1263 = vst.msk [vmem:[%s205 + $0x2] sm:$0x3] %vm1261, %v1258
        %1264 = vst.msk [vmem:[%s205 + $0x4] sm:$0x3] %vm1261, %v1259
        %1265 = vst.msk [vmem:[%s205 + $0x6] sm:$0x3] %vm1261, %v1260
        %s1266 = sand.u32 %s116, 1
        %s1267 = scalar_lea.sflag [#allocation5], %s1266
        %s1268 = sand.u32 %s116, 1
        %s1269 = smul.addr %s1268, 8
        %s1270 = scalar_lea.vmem [#allocation6], %s1269
        // Predicated region
        $region41: #{tpu_custom_call.1} parent=35 // pred_check
          %p1271 = pneg %p126
        $region42: #{tpu_custom_call.1} parent=35 // pred_check_branch
          %1273 = sbr.rel (%p1271) target = $region44
        $region43: #{tpu_custom_call.1} parent=35 // pred_region
          %s1275 = ssub.s32 128, 128
          %1276 = vsyncadd %s1267, %s1275
          %s1277 = smul.addr %s19, 4
          %s1278 = smul.addr %s1277, 32
          %s1279 = scalar_lea.hbm %s4, %s1278
          %s1280 = sshll.u32 %s1270, 4
          %s1281 = int_to_ptr.vmem [resolvable:$true] %s1280
          %1286 = dma.vmem_to_hbm [thread:$0]  %s1281, 128, %s1279, %s1267, 32, 32, 2
        $region44: #{tpu_custom_call.1} parent=35 // pred_fallthru
          _
      $region36: #{tpu_custom_call.1} parent=5 // pred_fallthru
        _
      %p1287 = scmp.le.s32.totalorder 2, %s14
      // Predicated region
      $region45: #{tpu_custom_call.1} parent=5 // pred_check
        %p1288 = pneg %p1287
      $region46: #{tpu_custom_call.1} parent=5 // pred_check_branch
        %1290 = sbr.rel (%p1288) target = $region48
      $region47: #{tpu_custom_call.1} parent=5 // pred_region
        %s1291 = ssub.s32 %s14, 2
        // Predicated region
        $region49: #{tpu_custom_call.1} parent=47 // pred_check
          %p1292 = pneg %p132
        $region50: #{tpu_custom_call.1} parent=47 // pred_check_branch
          %1294 = sbr.rel (%p1292) target = $region52
        $region51: #{tpu_custom_call.1} parent=47 // pred_region
          %s1295 = sand.u32 %s117, 1
          %s1296 = scalar_lea.sflag [#allocation5], %s1295
          %s1297 = sand.u32 %s117, 1
          %s1298 = smul.addr %s1297, 8
          %s1299 = scalar_lea.vmem [#allocation6], %s1298
          %1300 = dma.done %s1296, 128
        $region52: #{tpu_custom_call.1} parent=47 // pred_fallthru
          _
      $region48: #{tpu_custom_call.1} parent=5 // pred_fallthru
        _
    $region6: #{tpu_custom_call.1} parent=1 // loop_footer
      %s18 = sadd.s32 1, %s14
    $region7: #{tpu_custom_call.1} parent=1 // loop_footer_branch
      %13 = sbr.rel target = $region3
    $region8: #{tpu_custom_call.1} parent=1 // loop_exit
      _
    %1301 = vsyncpa [#allocation4], 1
    %s1302 = scalar_lea.sflag [#allocation4], 1
    %1303 = vsyncpa %s1302, 1
    %1304 = vsyncpa [#allocation5], 1
    %s1305 = scalar_lea.sflag [#allocation5], 1
    %1306 = vsyncpa %s1305, 1

</llo_original>
